<compile_context>
chip_gen: v7x
topology: tpu7x:2x2x1
jax: 0.10.0
libtpu: 0.0.40
codegen_flags: <defaults>
</compile_context>

<pallas_src>
import functools

import jax
import jax.numpy as jnp
from jax.experimental import pallas as pl
from jax.experimental.pallas import tpu as pltpu

HEAD_PAD = 128  # lane-pad the 12-wide output head to a full 128-lane vreg


def fcl_kernel(x_ref, w1_ref, b1_ref, w2_ref, b2_ref, w3_ref, b3_ref, o_ref):
    # x arrives pre-packed [rgb | flow] in bf16 -> one K=in_dim MXU pass.
    x = x_ref[...]

    h1 = jnp.dot(x, w1_ref[...], preferred_element_type=jnp.float32) + b1_ref[...]
    h1 = jnp.maximum(h1, 0.0).astype(jnp.bfloat16)      # ReLU
    # TODO(synk): dropout1 (p=0.6) is identity at inference; omitted.

    h2 = jnp.dot(h1, w2_ref[...], preferred_element_type=jnp.float32) + b2_ref[...]
    h2 = jnp.maximum(h2, 0.0).astype(jnp.bfloat16)      # ReLU
    # TODO(synk): dropout2 (p=0.6) is identity at inference; omitted.

    logits = jnp.dot(h2, w3_ref[...], preferred_element_type=jnp.float32) + b3_ref[...]
    # sigmoid: exp on the EUP, approx reciprocal also on the EUP (VPU slot free).
    o_ref[...] = pl.reciprocal(1.0 + jnp.exp(-logits), approx=True).astype(o_ref.dtype)


def _round_up(n, m):
    return ((n + m - 1) // m) * m


@functools.partial(jax.jit, static_argnames=("batch_tile",))
def fcl_forward(feature_rgb, feature_flow, params, *, batch_tile=None):
    """feature_rgb: [B, rgb_in], feature_flow: [B, flow_in] -> [B, 12] (f32)."""
    w1, b1, w2, b2, w3, b3 = params
    B, rgb_in = feature_rgb.shape
    flow_in = feature_flow.shape[1]
    in_dim = rgb_in + flow_in

    # --- batch tile selection -----------------------------------------------
    # Full-height MXU tiles, capped at 512 rows; aim for >=2 grid steps when
    # the batch permits so the "parallel" grid axis can shard across v7x's two
    # TensorCores (irrelevant on v5e/v6e).
    if batch_tile is None:
        batch_tile = min(512, _round_up(max(B // 2, 1), 16))
    TB = batch_tile
    Bp = _round_up(B, TB)

    # --- weight preprocessing (fused under jit) -----------------------------
    # bf16 weights (f32 accumulation in-kernel); biases stay f32.
    w1b = w1.astype(jnp.bfloat16)                         # [in_dim, 1024]
    w2b = w2.astype(jnp.bfloat16)                         # [1024, 256]
    # Lane-pad the 12-wide head to 128 so the output store is unmasked.
    w3p = jnp.pad(w3, ((0, 0), (0, HEAD_PAD - w3.shape[1]))).astype(jnp.bfloat16)
    b3p = jnp.pad(b3, ((0, 0), (0, HEAD_PAD - b3.shape[1]))).astype(jnp.float32)
    b1f = b1.astype(jnp.float32)
    b2f = b2.astype(jnp.float32)

    # --- activation packing ---------------------------------------------------
    # torch.cat folded into a single packed bf16 slab -> one K=in_dim layer-1
    # matmul in-kernel.  The packed stream (Bp * in_dim * 2 B) is tiny next to
    # the weights and the padded output, so this wrapper op is noise.
    x = jnp.concatenate([feature_rgb, feature_flow], axis=1).astype(jnp.bfloat16)
    if Bp != B:
        x = jnp.pad(x, ((0, Bp - B), (0, 0)))

    # Weights/biases: whole array, constant block index -> stay VMEM-resident
    # across batch tiles (no re-DMA between grid steps).
    resident = lambda a: pl.BlockSpec(a.shape, lambda i: (0, 0))

    out = pl.pallas_call(
        fcl_kernel,
        out_shape=jax.ShapeDtypeStruct((Bp, HEAD_PAD), jnp.bfloat16),
        grid=(Bp // TB,),
        in_specs=[
            pl.BlockSpec((TB, in_dim), lambda i: (i, 0)),
            resident(w1b), resident(b1f),
            resident(w2b), resident(b2f),
            resident(w3p), resident(b3p),
        ],
        out_specs=pl.BlockSpec((TB, HEAD_PAD), lambda i: (i, 0)),
        compiler_params=pltpu.CompilerParams(
            dimension_semantics=("parallel",),   # batch tiles independent
            vmem_limit_bytes=32 << 20,           # fits TB<=1024 activations + weights
        ),
    )(x, w1b, b1f, w2b, b2f, w3p, b3p)

    # NOTE: consumers living under the same jit should read the padded
    # [Bp, 128] bf16 buffer directly (lanes 12..127 hold sigmoid(0)=0.5) to
    # skip this extra pass over the padded output.
    return out[:B, :12].astype(jnp.float32)


def init_params(key, rgb_input_size, flow_input_size):
    """Deterministic init matching nn.Linear shapes (uniform +-1/sqrt(fan_in))."""
    in_dim = rgb_input_size + flow_input_size
    dims = [(in_dim, 1024), (1024, 256), (256, 12)]
    params = []
    for (fan_in, fan_out) in dims:
        key, kw, kb = jax.random.split(key, 3)
        bound = 1.0 / (fan_in ** 0.5)
        w = jax.random.uniform(kw, (fan_in, fan_out), jnp.float32, -bound, bound)
        b = jax.random.uniform(kb, (1, fan_out), jnp.float32, -bound, bound)
        params += [w, b]
    return tuple(params)


if __name__ == "__main__":
    rgb_input_size = 32
    flow_input_size = 32
    batch = 8

    key = jax.random.PRNGKey(0)
    key, k_rgb, k_flow, k_param = jax.random.split(key, 4)

    feature_rgb = jax.random.normal(k_rgb, (batch, rgb_input_size), jnp.float32)
    feature_flow = jax.random.normal(k_flow, (batch, flow_input_size), jnp.float32)
    params = init_params(k_param, rgb_input_size, flow_input_size)

    out = fcl_forward(feature_rgb, feature_flow, params)
    out = jax.block_until_ready(out)

    # Sanity check against pure-f32 JAX reference.  Kernel uses bf16 weights /
    # activations / output (f32 accumulation) and an approx reciprocal, so
    # tolerance is relaxed accordingly.
    x = jnp.concatenate([feature_rgb, feature_flow], axis=1)
    w1, b1, w2, b2, w3, b3 = params
    h1 = jnp.maximum(x @ w1 + b1, 0.0)
    h2 = jnp.maximum(h1 @ w2 + b2, 0.0)
    ref = jax.nn.sigmoid(h2 @ w3 + b3)

    assert out.shape == (batch, 12)
    assert jnp.allclose(out, ref, atol=3e-2, rtol=3e-2), float(jnp.max(jnp.abs(out - ref)))

    print("KERNEL_OK")
</pallas_src>

<mosaic_0001>
module attributes {stable_mosaic.version = 11 : i64} {
  func.func @fcl_kernel(%arg0: i32, %arg1: memref<16x64xbf16, #tpu.memory_space<vmem>>, %arg2: memref<64x1024xbf16, #tpu.memory_space<vmem>>, %arg3: memref<1x1024xf32, #tpu.memory_space<vmem>>, %arg4: memref<1024x256xbf16, #tpu.memory_space<vmem>>, %arg5: memref<1x256xf32, #tpu.memory_space<vmem>>, %arg6: memref<256x128xbf16, #tpu.memory_space<vmem>>, %arg7: memref<1x128xf32, #tpu.memory_space<vmem>>, %arg8: memref<16x128xbf16, #tpu.memory_space<vmem>>) attributes {dimension_semantics = [#tpu.dimension_semantics<parallel>], iteration_bounds = array<i64: 1>, scalar_prefetch = 0 : i64, scratch_operands = 0 : i64, tpu.core_type = #tpu.core_type<tc>, window_params = [{transform_indices = @transform_0, window_bounds = array<i64: 16, 64>}, {pipeline_mode = #tpu.pipeline_mode<synchronous>, transform_indices = @transform_1, window_bounds = array<i64: 64, 1024>}, {pipeline_mode = #tpu.pipeline_mode<synchronous>, transform_indices = @transform_2, window_bounds = array<i64: 1, 1024>}, {pipeline_mode = #tpu.pipeline_mode<synchronous>, transform_indices = @transform_3, window_bounds = array<i64: 1024, 256>}, {pipeline_mode = #tpu.pipeline_mode<synchronous>, transform_indices = @transform_4, window_bounds = array<i64: 1, 256>}, {pipeline_mode = #tpu.pipeline_mode<synchronous>, transform_indices = @transform_5, window_bounds = array<i64: 256, 128>}, {pipeline_mode = #tpu.pipeline_mode<synchronous>, transform_indices = @transform_6, window_bounds = array<i64: 1, 128>}, {transform_indices = @transform_7, window_bounds = array<i64: 16, 128>}]} {
    %c0 = arith.constant 0 : index
    %c0_0 = arith.constant 0 : index
    %0 = vector.load %arg1[%c0, %c0_0] : memref<16x64xbf16, #tpu.memory_space<vmem>>, vector<16x64xbf16>
    %c0_1 = arith.constant 0 : index
    %c0_2 = arith.constant 0 : index
    %1 = vector.load %arg2[%c0_1, %c0_2] : memref<64x1024xbf16, #tpu.memory_space<vmem>>, vector<64x1024xbf16>
    %cst = arith.constant dense<0.000000e+00> : vector<16x1024xf32>
    %2 = tpu.matmul %0, %1, %cst {dimension_numbers = #tpu.dot_dimension_numbers<[1], [0], [0], [1], [0, 0, 1, 1], [], []>} : vector<16x64xbf16>, vector<64x1024xbf16>, vector<16x1024xf32> -> vector<16x1024xf32>
    %c0_3 = arith.constant 0 : index
    %c0_4 = arith.constant 0 : index
    %3 = vector.load %arg3[%c0_3, %c0_4] : memref<1x1024xf32, #tpu.memory_space<vmem>>, vector<1x1024xf32>
    %4 = vector.broadcast %3 : vector<1x1024xf32> to vector<16x1024xf32>
    %5 = arith.addf %2, %4 : vector<16x1024xf32>
    %cst_5 = arith.constant 0.000000e+00 : f32
    %6 = vector.broadcast %cst_5 : f32 to vector<16x1024xf32>
    %7 = arith.maximumf %5, %6 : vector<16x1024xf32>
    %8 = arith.truncf %7 : vector<16x1024xf32> to vector<16x1024xbf16>
    %c0_6 = arith.constant 0 : index
    %c0_7 = arith.constant 0 : index
    %9 = vector.load %arg4[%c0_6, %c0_7] : memref<1024x256xbf16, #tpu.memory_space<vmem>>, vector<1024x256xbf16>
    %cst_8 = arith.constant dense<0.000000e+00> : vector<16x256xf32>
    %10 = tpu.matmul %8, %9, %cst_8 {dimension_numbers = #tpu.dot_dimension_numbers<[1], [0], [0], [1], [0, 0, 1, 1], [], []>} : vector<16x1024xbf16>, vector<1024x256xbf16>, vector<16x256xf32> -> vector<16x256xf32>
    %c0_9 = arith.constant 0 : index
    %c0_10 = arith.constant 0 : index
    %11 = vector.load %arg5[%c0_9, %c0_10] : memref<1x256xf32, #tpu.memory_space<vmem>>, vector<1x256xf32>
    %12 = vector.broadcast %11 : vector<1x256xf32> to vector<16x256xf32>
    %13 = arith.addf %10, %12 : vector<16x256xf32>
    %cst_11 = arith.constant 0.000000e+00 : f32
    %14 = vector.broadcast %cst_11 : f32 to vector<16x256xf32>
    %15 = arith.maximumf %13, %14 : vector<16x256xf32>
    %16 = arith.truncf %15 : vector<16x256xf32> to vector<16x256xbf16>
    %c0_12 = arith.constant 0 : index
    %c0_13 = arith.constant 0 : index
    %17 = vector.load %arg6[%c0_12, %c0_13] : memref<256x128xbf16, #tpu.memory_space<vmem>>, vector<256x128xbf16>
    %cst_14 = arith.constant dense<0.000000e+00> : vector<16x128xf32>
    %18 = tpu.matmul %16, %17, %cst_14 {dimension_numbers = #tpu.dot_dimension_numbers<[1], [0], [0], [1], [0, 0, 1, 1], [], []>} : vector<16x256xbf16>, vector<256x128xbf16>, vector<16x128xf32> -> vector<16x128xf32>
    %c0_15 = arith.constant 0 : index
    %c0_16 = arith.constant 0 : index
    %19 = vector.load %arg7[%c0_15, %c0_16] : memref<1x128xf32, #tpu.memory_space<vmem>>, vector<1x128xf32>
    %20 = vector.broadcast %19 : vector<1x128xf32> to vector<16x128xf32>
    %21 = arith.addf %18, %20 : vector<16x128xf32>
    %cst_17 = arith.constant 0.000000e+00 : f32
    %22 = vector.broadcast %cst_17 : f32 to vector<16x128xf32>
    %23 = arith.subf %22, %21 : vector<16x128xf32>
    %24 = math.exp %23 : vector<16x128xf32>
    %cst_18 = arith.constant 1.000000e+00 : f32
    %25 = vector.broadcast %cst_18 : f32 to vector<16x128xf32>
    %26 = arith.addf %25, %24 : vector<16x128xf32>
    %27 = tpu.reciprocal %26 {approx = true} : vector<16x128xf32> -> vector<16x128xf32>
    %28 = arith.truncf %27 : vector<16x128xf32> to vector<16x128xbf16>
    %c0_19 = arith.constant 0 : index
    %c0_20 = arith.constant 0 : index
    %29 = vector.load %arg8[%c0_19, %c0_20] : memref<16x128xbf16, #tpu.memory_space<vmem>>, vector<16x128xbf16>
    tpu.vector_store %arg8[%c0_19, %c0_20], %28 {strides = array<i32>} : memref<16x128xbf16, #tpu.memory_space<vmem>>, vector<16x128xbf16>,
    return
  }
  func.func @transform_0(%arg0: i32) -> (i32, i32) {
    %c0_i32 = arith.constant 0 : i32
    %c0_i32_0 = arith.constant 0 : i32
    return %arg0, %c0_i32 : i32, i32
  }
  func.func @transform_1(%arg0: i32) -> (i32, i32) {
    %c0_i32 = arith.constant 0 : i32
    %c0_i32_0 = arith.constant 0 : i32
    %c0_i32_1 = arith.constant 0 : i32
    return %c0_i32, %c0_i32_0 : i32, i32
  }
  func.func @transform_2(%arg0: i32) -> (i32, i32) {
    %c0_i32 = arith.constant 0 : i32
    %c0_i32_0 = arith.constant 0 : i32
    %c0_i32_1 = arith.constant 0 : i32
    return %c0_i32, %c0_i32_0 : i32, i32
  }
  func.func @transform_3(%arg0: i32) -> (i32, i32) {
    %c0_i32 = arith.constant 0 : i32
    %c0_i32_0 = arith.constant 0 : i32
    %c0_i32_1 = arith.constant 0 : i32
    return %c0_i32, %c0_i32_0 : i32, i32
  }
  func.func @transform_4(%arg0: i32) -> (i32, i32) {
    %c0_i32 = arith.constant 0 : i32
    %c0_i32_0 = arith.constant 0 : i32
    %c0_i32_1 = arith.constant 0 : i32
    return %c0_i32, %c0_i32_0 : i32, i32
  }
  func.func @transform_5(%arg0: i32) -> (i32, i32) {
    %c0_i32 = arith.constant 0 : i32
    %c0_i32_0 = arith.constant 0 : i32
    %c0_i32_1 = arith.constant 0 : i32
    return %c0_i32, %c0_i32_0 : i32, i32
  }
  func.func @transform_6(%arg0: i32) -> (i32, i32) {
    %c0_i32 = arith.constant 0 : i32
    %c0_i32_0 = arith.constant 0 : i32
    %c0_i32_1 = arith.constant 0 : i32
    return %c0_i32, %c0_i32_0 : i32, i32
  }
  func.func @transform_7(%arg0: i32) -> (i32, i32) {
    %c0_i32 = arith.constant 0 : i32
    %c0_i32_0 = arith.constant 0 : i32
    return %arg0, %c0_i32 : i32, i32
  }
}

</mosaic_0001>

<llo_original>
// kernel: fcl_forward.1
$region0: #{fcl_forward.1}
  #allocation0 [shape = 'u32[]', space=smem, size = 0x4, offset = 0x4, fixed_abs, tag = 'smem constant byte address 0x4 - core index']
  #allocation1 [shape = 'u32[144,128]{1,0:T(1,128)}', space=vmem, size = 0x12000, scoped, tag = 'internal scratch']
  %s0 = inlined_call_operand.vmem [shape: bf16[16,64], index: 0, kind: input, shape index: {}]
  %s1 = inlined_call_operand.vmem [shape: bf16[64,1024], index: 1, kind: input, shape index: {}]
  %s2 = inlined_call_operand.vmem [shape: f32[1,1024], index: 2, kind: input, shape index: {}]
  %s3 = inlined_call_operand.vmem [shape: bf16[1024,256], index: 3, kind: input, shape index: {}]
  %s4 = inlined_call_operand.vmem [shape: f32[1,256], index: 4, kind: input, shape index: {}]
  %s5 = inlined_call_operand.vmem [shape: bf16[256,128], index: 5, kind: input, shape index: {}]
  %s6 = inlined_call_operand.vmem [shape: f32[1,128], index: 6, kind: input, shape index: {}]
  %s7 = inlined_call_operand.vmem [shape: bf16[16,128], index: 7, kind: output, shape index: {}]
  %s8 = sld [smem:[#allocation0]]
  $region38: #{fcl_forward.1} parent=0
    _
  %s10 = ssub.s32 1, %s8
  %s11 = scalar_select 0, %s10, %s8
  // Predicated region
  $region2: #{fcl_forward.1} parent=0 // pred_check
    _
  $region3: #{fcl_forward.1} parent=0 // pred_check_branch
    %13 = sbr.rel (0) target = $region5
  $region4: #{fcl_forward.1} parent=0 // pred_region
    _
  $region5: #{fcl_forward.1} parent=0 // pred_fallthru
    _
  // Predicated region
  $region6: #{fcl_forward.1} parent=0 // pred_check
    _
  $region7: #{fcl_forward.1} parent=0 // pred_check_branch
    %15 = sbr.rel (0) target = $region9
  $region8: #{fcl_forward.1} parent=0 // pred_region
    _
  $region9: #{fcl_forward.1} parent=0 // pred_fallthru
    _
  // Predicated region
  $region10: #{fcl_forward.1} parent=0 // pred_check
    _
  $region11: #{fcl_forward.1} parent=0 // pred_check_branch
    %17 = sbr.rel (0) target = $region13
  $region12: #{fcl_forward.1} parent=0 // pred_region
    _
  $region13: #{fcl_forward.1} parent=0 // pred_fallthru
    _
  // Predicated region
  $region14: #{fcl_forward.1} parent=0 // pred_check
    _
  $region15: #{fcl_forward.1} parent=0 // pred_check_branch
    %19 = sbr.rel (0) target = $region17
  $region16: #{fcl_forward.1} parent=0 // pred_region
    _
  $region17: #{fcl_forward.1} parent=0 // pred_fallthru
    _
  // Predicated region
  $region18: #{fcl_forward.1} parent=0 // pred_check
    _
  $region19: #{fcl_forward.1} parent=0 // pred_check_branch
    %21 = sbr.rel (0) target = $region21
  $region20: #{fcl_forward.1} parent=0 // pred_region
    _
  $region21: #{fcl_forward.1} parent=0 // pred_fallthru
    _
  // Predicated region
  $region22: #{fcl_forward.1} parent=0 // pred_check
    _
  $region23: #{fcl_forward.1} parent=0 // pred_check_branch
    %23 = sbr.rel (0) target = $region25
  $region24: #{fcl_forward.1} parent=0 // pred_region
    _
  $region25: #{fcl_forward.1} parent=0 // pred_fallthru
    _
  // Predicated region
  $region26: #{fcl_forward.1} parent=0 // pred_check
    _
  $region27: #{fcl_forward.1} parent=0 // pred_check_branch
    %25 = sbr.rel (0) target = $region29
  $region28: #{fcl_forward.1} parent=0 // pred_region
    _
  $region29: #{fcl_forward.1} parent=0 // pred_fallthru
    _
  %v27 = vld [vmem:[%s0] sm:$0xf]
  %v28 = vld [vmem:[%s0 + $0x4] sm:$0xf]
  %v29 = vld [vmem:[%s1] sm:$0xff]
  %v30 = vld [vmem:[%s1 + $0x8] sm:$0xff]
  %v31 = vld [vmem:[%s1 + $0x10] sm:$0xff]
  %v32 = vld [vmem:[%s1 + $0x18] sm:$0xff]
  %v33 = vld [vmem:[%s1 + $0x20] sm:$0xff]
  %v34 = vld [vmem:[%s1 + $0x28] sm:$0xff]
  %v35 = vld [vmem:[%s1 + $0x30] sm:$0xff]
  %v36 = vld [vmem:[%s1 + $0x38] sm:$0xff]
  %v37 = vld [vmem:[%s1 + $0x40] sm:$0xff]
  %v38 = vld [vmem:[%s1 + $0x48] sm:$0xff]
  %v39 = vld [vmem:[%s1 + $0x50] sm:$0xff]
  %v40 = vld [vmem:[%s1 + $0x58] sm:$0xff]
  %v41 = vld [vmem:[%s1 + $0x60] sm:$0xff]
  %v42 = vld [vmem:[%s1 + $0x68] sm:$0xff]
  %v43 = vld [vmem:[%s1 + $0x70] sm:$0xff]
  %v44 = vld [vmem:[%s1 + $0x78] sm:$0xff]
  %v45 = vld [vmem:[%s1 + $0x80] sm:$0xff]
  %v46 = vld [vmem:[%s1 + $0x88] sm:$0xff]
  %v47 = vld [vmem:[%s1 + $0x90] sm:$0xff]
  %v48 = vld [vmem:[%s1 + $0x98] sm:$0xff]
  %v49 = vld [vmem:[%s1 + $0xa0] sm:$0xff]
  %v50 = vld [vmem:[%s1 + $0xa8] sm:$0xff]
  %v51 = vld [vmem:[%s1 + $0xb0] sm:$0xff]
  %v52 = vld [vmem:[%s1 + $0xb8] sm:$0xff]
  %v53 = vld [vmem:[%s1 + $0xc0] sm:$0xff]
  %v54 = vld [vmem:[%s1 + $0xc8] sm:$0xff]
  %v55 = vld [vmem:[%s1 + $0xd0] sm:$0xff]
  %v56 = vld [vmem:[%s1 + $0xd8] sm:$0xff]
  %v57 = vld [vmem:[%s1 + $0xe0] sm:$0xff]
  %v58 = vld [vmem:[%s1 + $0xe8] sm:$0xff]
  %v59 = vld [vmem:[%s1 + $0xf0] sm:$0xff]
  %v60 = vld [vmem:[%s1 + $0xf8] sm:$0xff]
  %v61 = vld [vmem:[%s2] sm:$0xff]
  %v63 = vlaneseq
  %v64 = vshrl.u32 %v63, 7
  %v65 = vsub.s32 0, %v64
  %v66 = vrot.slane %v61, %v65
  %v67 = vlaneseq
  %v68 = vshrl.u32 %v67, 7
  %v69 = vsub.s32 1, %v68
  %v70 = vrot.slane %v61, %v69
  %v71 = vlaneseq
  %v72 = vshrl.u32 %v71, 7
  %v73 = vsub.s32 2, %v72
  %v74 = vrot.slane %v61, %v73
  %v75 = vlaneseq
  %v76 = vshrl.u32 %v75, 7
  %v77 = vsub.s32 3, %v76
  %v78 = vrot.slane %v61, %v77
  %v79 = vlaneseq
  %v80 = vshrl.u32 %v79, 7
  %v81 = vsub.s32 4, %v80
  %v82 = vrot.slane %v61, %v81
  %v83 = vlaneseq
  %v84 = vshrl.u32 %v83, 7
  %v85 = vsub.s32 5, %v84
  %v86 = vrot.slane %v61, %v85
  %v87 = vlaneseq
  %v88 = vshrl.u32 %v87, 7
  %v89 = vsub.s32 6, %v88
  %v90 = vrot.slane %v61, %v89
  %v91 = vlaneseq
  %v92 = vshrl.u32 %v91, 7
  %v93 = vsub.s32 7, %v92
  %v94 = vrot.slane %v61, %v93
  %v105 = vunpack.c.l.b16 %v27
  %v106 = vunpack.c.l.b16 %v28
  %v107 = vpack.c.b16 %v106, %v105
  %v140 = vunpack.c.l.b16 %v29
  %v141 = vunpack.c.h.b16 %v29
  %v142 = vunpack.c.l.b16 %v30
  %v143 = vunpack.c.h.b16 %v30
  %v144 = vunpack.c.l.b16 %v31
  %v145 = vunpack.c.h.b16 %v31
  %v146 = vunpack.c.l.b16 %v32
  %v147 = vunpack.c.h.b16 %v32
  %v148 = vunpack.c.l.b16 %v33
  %v149 = vunpack.c.h.b16 %v33
  %v150 = vunpack.c.l.b16 %v34
  %v151 = vunpack.c.h.b16 %v34
  %v152 = vunpack.c.l.b16 %v35
  %v153 = vunpack.c.h.b16 %v35
  %v154 = vunpack.c.l.b16 %v36
  %v155 = vunpack.c.h.b16 %v36
  %v156 = vunpack.c.l.b16 %v37
  %v157 = vunpack.c.h.b16 %v37
  %v158 = vunpack.c.l.b16 %v38
  %v159 = vunpack.c.h.b16 %v38
  %v160 = vunpack.c.l.b16 %v39
  %v161 = vunpack.c.h.b16 %v39
  %v162 = vunpack.c.l.b16 %v40
  %v163 = vunpack.c.h.b16 %v40
  %v164 = vunpack.c.l.b16 %v41
  %v165 = vunpack.c.h.b16 %v41
  %v166 = vunpack.c.l.b16 %v42
  %v167 = vunpack.c.h.b16 %v42
  %v168 = vunpack.c.l.b16 %v43
  %v169 = vunpack.c.h.b16 %v43
  %v170 = vunpack.c.l.b16 %v44
  %v171 = vunpack.c.h.b16 %v44
  %v172 = vunpack.c.l.b16 %v45
  %v173 = vunpack.c.h.b16 %v45
  %v174 = vunpack.c.l.b16 %v46
  %v175 = vunpack.c.h.b16 %v46
  %v176 = vunpack.c.l.b16 %v47
  %v177 = vunpack.c.h.b16 %v47
  %v178 = vunpack.c.l.b16 %v48
  %v179 = vunpack.c.h.b16 %v48
  %v180 = vunpack.c.l.b16 %v49
  %v181 = vunpack.c.h.b16 %v49
  %v182 = vunpack.c.l.b16 %v50
  %v183 = vunpack.c.h.b16 %v50
  %v184 = vunpack.c.l.b16 %v51
  %v185 = vunpack.c.h.b16 %v51
  %v186 = vunpack.c.l.b16 %v52
  %v187 = vunpack.c.h.b16 %v52
  %v188 = vunpack.c.l.b16 %v53
  %v189 = vunpack.c.h.b16 %v53
  %v190 = vunpack.c.l.b16 %v54
  %v191 = vunpack.c.h.b16 %v54
  %v192 = vunpack.c.l.b16 %v55
  %v193 = vunpack.c.h.b16 %v55
  %v194 = vunpack.c.l.b16 %v56
  %v195 = vunpack.c.h.b16 %v56
  %v196 = vunpack.c.l.b16 %v57
  %v197 = vunpack.c.h.b16 %v57
  %v198 = vunpack.c.l.b16 %v58
  %v199 = vunpack.c.h.b16 %v58
  %v200 = vunpack.c.l.b16 %v59
  %v201 = vunpack.c.h.b16 %v59
  %v202 = vunpack.c.l.b16 %v60
  %v203 = vunpack.c.h.b16 %v60
  %v204 = vpack.c.b16 %v148, %v140
  %v205 = vpack.c.b16 %v149, %v141
  %v206 = vpack.c.b16 %v150, %v142
  %v207 = vpack.c.b16 %v151, %v143
  %v208 = vpack.c.b16 %v152, %v144
  %v209 = vpack.c.b16 %v153, %v145
  %v210 = vpack.c.b16 %v154, %v146
  %v211 = vpack.c.b16 %v155, %v147
  %v212 = vpack.c.b16 %v164, %v156
  %v213 = vpack.c.b16 %v165, %v157
  %v214 = vpack.c.b16 %v166, %v158
  %v215 = vpack.c.b16 %v167, %v159
  %v216 = vpack.c.b16 %v168, %v160
  %v217 = vpack.c.b16 %v169, %v161
  %v218 = vpack.c.b16 %v170, %v162
  %v219 = vpack.c.b16 %v171, %v163
  %v220 = vpack.c.b16 %v180, %v172
  %v221 = vpack.c.b16 %v181, %v173
  %v222 = vpack.c.b16 %v182, %v174
  %v223 = vpack.c.b16 %v183, %v175
  %v224 = vpack.c.b16 %v184, %v176
  %v225 = vpack.c.b16 %v185, %v177
  %v226 = vpack.c.b16 %v186, %v178
  %v227 = vpack.c.b16 %v187, %v179
  %v228 = vpack.c.b16 %v196, %v188
  %v229 = vpack.c.b16 %v197, %v189
  %v230 = vpack.c.b16 %v198, %v190
  %v231 = vpack.c.b16 %v199, %v191
  %v232 = vpack.c.b16 %v200, %v192
  %v233 = vpack.c.b16 %v201, %v193
  %v234 = vpack.c.b16 %v202, %v194
  %v235 = vpack.c.b16 %v203, %v195
  %vm268 = vcmask 523264
  %v270 = vsel %vm268, %v107, 0
  %272 = vmatprep.subr.bf16.mxu0 %v205
  %273 = vmatpush1.bf16.msra.mxu0 %v204
  %274 = vmatprep.subr.bf16.mxu0 %v213
  %275 = vmatpush1.bf16.msra.mxu0 %v212
  %276 = vmatprep.subr.bf16.mxu0 %v221
  %277 = vmatpush1.bf16.msra.mxu0 %v220
  %278 = vmatprep.subr.bf16.mxu0 %v229
  %279 = vmatpush1.bf16.msra.mxu0 %v228
  %280 = vmatprep.subr.bf16.mxu0 0
  %281 = vmatpush1.bf16.msra.mxu0 0
  %282 = vmatprep.subr.bf16.mxu0 0
  %283 = vmatpush1.bf16.msra.mxu0 0
  %284 = vmatprep.subr.bf16.mxu0 0
  %285 = vmatpush1.bf16.msra.mxu0 0
  %286 = vmatprep.subr.bf16.mxu0 0
  %287 = vmatpush1.bf16.msra.mxu0 0
  %288 = vmatprep.subr.bf16.mxu0 0
  %289 = vmatpush1.bf16.msra.mxu0 0
  %290 = vmatprep.subr.bf16.mxu0 0
  %291 = vmatpush1.bf16.msra.mxu0 0
  %292 = vmatprep.subr.bf16.mxu0 0
  %293 = vmatpush1.bf16.msra.mxu0 0
  %294 = vmatprep.subr.bf16.mxu0 0
  %295 = vmatpush1.bf16.msra.mxu0 0
  %296 = vmatprep.subr.bf16.mxu0 0
  %297 = vmatpush1.bf16.msra.mxu0 0
  %298 = vmatprep.subr.bf16.mxu0 0
  %299 = vmatpush1.bf16.msra.mxu0 0
  %300 = vmatprep.subr.bf16.mxu0 0
  %301 = vmatpush1.bf16.msra.mxu0 0
  %302 = vmatprep.subr.bf16.mxu0 0
  %303 = vmatpush1.bf16.msra.mxu0 0
  %304 = vmatprep.mubr.bf16.mxu0 0
  %305 = vmatmul.mubr.bf16.gmra.mrb[0].mxu0 %v270
  %v306 = vpop.f32.mrb[0].mxu0
  %v307 = vadd.f32 %v66, %v306
  %v308 = vpop.f32.mrb[0].mxu0
  %v309 = vadd.f32 %v70, %v308
  %v310 = vpop.f32.mrb[0].mxu0
  %v311 = vadd.f32 %v66, %v310
  %v312 = vpop.f32.mrb[0].mxu0
  %v313 = vadd.f32 %v70, %v312
  %314 = vdwg.mxu0
  %315 = vmatprep.subr.bf16.mxu0 %v207
  %316 = vmatpush1.bf16.msra.mxu0 %v206
  %317 = vmatprep.subr.bf16.mxu0 %v215
  %318 = vmatpush1.bf16.msra.mxu0 %v214
  %319 = vmatprep.subr.bf16.mxu0 %v223
  %320 = vmatpush1.bf16.msra.mxu0 %v222
  %321 = vmatprep.subr.bf16.mxu0 %v231
  %322 = vmatpush1.bf16.msra.mxu0 %v230
  %323 = vmatprep.subr.bf16.mxu0 0
  %324 = vmatpush1.bf16.msra.mxu0 0
  %325 = vmatprep.subr.bf16.mxu0 0
  %326 = vmatpush1.bf16.msra.mxu0 0
  %327 = vmatprep.subr.bf16.mxu0 0
  %328 = vmatpush1.bf16.msra.mxu0 0
  %329 = vmatprep.subr.bf16.mxu0 0
  %330 = vmatpush1.bf16.msra.mxu0 0
  %331 = vmatprep.subr.bf16.mxu0 0
  %332 = vmatpush1.bf16.msra.mxu0 0
  %333 = vmatprep.subr.bf16.mxu0 0
  %334 = vmatpush1.bf16.msra.mxu0 0
  %335 = vmatprep.subr.bf16.mxu0 0
  %336 = vmatpush1.bf16.msra.mxu0 0
  %337 = vmatprep.subr.bf16.mxu0 0
  %338 = vmatpush1.bf16.msra.mxu0 0
  %339 = vmatprep.subr.bf16.mxu0 0
  %340 = vmatpush1.bf16.msra.mxu0 0
  %341 = vmatprep.subr.bf16.mxu0 0
  %342 = vmatpush1.bf16.msra.mxu0 0
  %343 = vmatprep.subr.bf16.mxu0 0
  %344 = vmatpush1.bf16.msra.mxu0 0
  %345 = vmatprep.subr.bf16.mxu0 0
  %346 = vmatpush1.bf16.msra.mxu0 0
  %347 = vmatprep.mubr.bf16.mxu0 0
  %348 = vmatmul.mubr.bf16.gmra.mrb[0].mxu0 %v270
  %v349 = vpop.f32.mrb[0].mxu0
  %v350 = vadd.f32 %v74, %v349
  %v351 = vpop.f32.mrb[0].mxu0
  %v352 = vadd.f32 %v78, %v351
  %v353 = vpop.f32.mrb[0].mxu0
  %v354 = vadd.f32 %v74, %v353
  %v355 = vpop.f32.mrb[0].mxu0
  %v356 = vadd.f32 %v78, %v355
  %357 = vdwg.mxu0
  %358 = vmatprep.subr.bf16.mxu0 %v209
  %359 = vmatpush1.bf16.msra.mxu0 %v208
  %360 = vmatprep.subr.bf16.mxu0 %v217
  %361 = vmatpush1.bf16.msra.mxu0 %v216
  %362 = vmatprep.subr.bf16.mxu0 %v225
  %363 = vmatpush1.bf16.msra.mxu0 %v224
  %364 = vmatprep.subr.bf16.mxu0 %v233
  %365 = vmatpush1.bf16.msra.mxu0 %v232
  %366 = vmatprep.subr.bf16.mxu0 0
  %367 = vmatpush1.bf16.msra.mxu0 0
  %368 = vmatprep.subr.bf16.mxu0 0
  %369 = vmatpush1.bf16.msra.mxu0 0
  %370 = vmatprep.subr.bf16.mxu0 0
  %371 = vmatpush1.bf16.msra.mxu0 0
  %372 = vmatprep.subr.bf16.mxu0 0
  %373 = vmatpush1.bf16.msra.mxu0 0
  %374 = vmatprep.subr.bf16.mxu0 0
  %375 = vmatpush1.bf16.msra.mxu0 0
  %376 = vmatprep.subr.bf16.mxu0 0
  %377 = vmatpush1.bf16.msra.mxu0 0
  %378 = vmatprep.subr.bf16.mxu0 0
  %379 = vmatpush1.bf16.msra.mxu0 0
  %380 = vmatprep.subr.bf16.mxu0 0
  %381 = vmatpush1.bf16.msra.mxu0 0
  %382 = vmatprep.subr.bf16.mxu0 0
  %383 = vmatpush1.bf16.msra.mxu0 0
  %384 = vmatprep.subr.bf16.mxu0 0
  %385 = vmatpush1.bf16.msra.mxu0 0
  %386 = vmatprep.subr.bf16.mxu0 0
  %387 = vmatpush1.bf16.msra.mxu0 0
  %388 = vmatprep.subr.bf16.mxu0 0
  %389 = vmatpush1.bf16.msra.mxu0 0
  %390 = vmatprep.mubr.bf16.mxu0 0
  %391 = vmatmul.mubr.bf16.gmra.mrb[0].mxu0 %v270
  %v392 = vpop.f32.mrb[0].mxu0
  %v393 = vadd.f32 %v82, %v392
  %v394 = vpop.f32.mrb[0].mxu0
  %v395 = vadd.f32 %v86, %v394
  %v396 = vpop.f32.mrb[0].mxu0
  %v397 = vadd.f32 %v82, %v396
  %v398 = vpop.f32.mrb[0].mxu0
  %v399 = vadd.f32 %v86, %v398
  %400 = vdwg.mxu0
  %401 = vmatprep.subr.bf16.mxu0 %v211
  %402 = vmatpush1.bf16.msra.mxu0 %v210
  %403 = vmatprep.subr.bf16.mxu0 %v219
  %404 = vmatpush1.bf16.msra.mxu0 %v218
  %405 = vmatprep.subr.bf16.mxu0 %v227
  %406 = vmatpush1.bf16.msra.mxu0 %v226
  %407 = vmatprep.subr.bf16.mxu0 %v235
  %408 = vmatpush1.bf16.msra.mxu0 %v234
  %409 = vmatprep.subr.bf16.mxu0 0
  %410 = vmatpush1.bf16.msra.mxu0 0
  %411 = vmatprep.subr.bf16.mxu0 0
  %412 = vmatpush1.bf16.msra.mxu0 0
  %413 = vmatprep.subr.bf16.mxu0 0
  %414 = vmatpush1.bf16.msra.mxu0 0
  %415 = vmatprep.subr.bf16.mxu0 0
  %416 = vmatpush1.bf16.msra.mxu0 0
  %417 = vmatprep.subr.bf16.mxu0 0
  %418 = vmatpush1.bf16.msra.mxu0 0
  %419 = vmatprep.subr.bf16.mxu0 0
  %420 = vmatpush1.bf16.msra.mxu0 0
  %421 = vmatprep.subr.bf16.mxu0 0
  %422 = vmatpush1.bf16.msra.mxu0 0
  %423 = vmatprep.subr.bf16.mxu0 0
  %424 = vmatpush1.bf16.msra.mxu0 0
  %425 = vmatprep.subr.bf16.mxu0 0
  %426 = vmatpush1.bf16.msra.mxu0 0
  %427 = vmatprep.subr.bf16.mxu0 0
  %428 = vmatpush1.bf16.msra.mxu0 0
  %429 = vmatprep.subr.bf16.mxu0 0
  %430 = vmatpush1.bf16.msra.mxu0 0
  %431 = vmatprep.subr.bf16.mxu0 0
  %432 = vmatpush1.bf16.msra.mxu0 0
  %433 = vmatprep.mubr.bf16.mxu0 0
  %434 = vmatmul.mubr.bf16.gmra.mrb[0].mxu0 %v270
  %v435 = vpop.f32.mrb[0].mxu0
  %v436 = vadd.f32 %v90, %v435
  %v437 = vpop.f32.mrb[0].mxu0
  %v438 = vadd.f32 %v94, %v437
  %v439 = vpop.f32.mrb[0].mxu0
  %v440 = vadd.f32 %v90, %v439
  %v441 = vpop.f32.mrb[0].mxu0
  %v442 = vadd.f32 %v94, %v441
  %443 = vdwg.mxu0
  %v444 = vmax.f32 %v307, 0.0
  %v445 = vmax.f32 %v309, 0.0
  %v446 = vmax.f32 %v350, 0.0
  %v447 = vmax.f32 %v352, 0.0
  %v448 = vmax.f32 %v393, 0.0
  %v449 = vmax.f32 %v395, 0.0
  %v450 = vmax.f32 %v436, 0.0
  %v451 = vmax.f32 %v438, 0.0
  %v452 = vmax.f32 %v311, 0.0
  %v453 = vmax.f32 %v313, 0.0
  %v454 = vmax.f32 %v354, 0.0
  %v455 = vmax.f32 %v356, 0.0
  %v456 = vmax.f32 %v397, 0.0
  %v457 = vmax.f32 %v399, 0.0
  %v458 = vmax.f32 %v440, 0.0
  %v459 = vmax.f32 %v442, 0.0
  %v460 = vpack.c.bf16 %v452, %v444
  %v461 = vpack.c.bf16 %v453, %v445
  %v462 = vpack.c.bf16 %v454, %v446
  %v463 = vpack.c.bf16 %v455, %v447
  %v464 = vpack.c.bf16 %v456, %v448
  %v465 = vpack.c.bf16 %v457, %v449
  %v466 = vpack.c.bf16 %v458, %v450
  %v467 = vpack.c.bf16 %v459, %v451
  %v468 = vld [vmem:[%s3] sm:$0xff]
  %v469 = vld [vmem:[%s3 + $0x8] sm:$0xff]
  %v470 = vld [vmem:[%s3 + $0x10] sm:$0xff]
  %v471 = vld [vmem:[%s3 + $0x18] sm:$0xff]
  %v472 = vld [vmem:[%s3 + $0x20] sm:$0xff]
  %v473 = vld [vmem:[%s3 + $0x28] sm:$0xff]
  %v474 = vld [vmem:[%s3 + $0x30] sm:$0xff]
  %v475 = vld [vmem:[%s3 + $0x38] sm:$0xff]
  %v476 = vld [vmem:[%s3 + $0x40] sm:$0xff]
  %v477 = vld [vmem:[%s3 + $0x48] sm:$0xff]
  %v478 = vld [vmem:[%s3 + $0x50] sm:$0xff]
  %v479 = vld [vmem:[%s3 + $0x58] sm:$0xff]
  %v480 = vld [vmem:[%s3 + $0x60] sm:$0xff]
  %v481 = vld [vmem:[%s3 + $0x68] sm:$0xff]
  %v482 = vld [vmem:[%s3 + $0x70] sm:$0xff]
  %v483 = vld [vmem:[%s3 + $0x78] sm:$0xff]
  %v484 = vld [vmem:[%s3 + $0x80] sm:$0xff]
  %v485 = vld [vmem:[%s3 + $0x88] sm:$0xff]
  %v486 = vld [vmem:[%s3 + $0x90] sm:$0xff]
  %v487 = vld [vmem:[%s3 + $0x98] sm:$0xff]
  %v488 = vld [vmem:[%s3 + $0xa0] sm:$0xff]
  %v489 = vld [vmem:[%s3 + $0xa8] sm:$0xff]
  %v490 = vld [vmem:[%s3 + $0xb0] sm:$0xff]
  %v491 = vld [vmem:[%s3 + $0xb8] sm:$0xff]
  %v492 = vld [vmem:[%s3 + $0xc0] sm:$0xff]
  %v493 = vld [vmem:[%s3 + $0xc8] sm:$0xff]
  %v494 = vld [vmem:[%s3 + $0xd0] sm:$0xff]
  %v495 = vld [vmem:[%s3 + $0xd8] sm:$0xff]
  %v496 = vld [vmem:[%s3 + $0xe0] sm:$0xff]
  %v497 = vld [vmem:[%s3 + $0xe8] sm:$0xff]
  %v498 = vld [vmem:[%s3 + $0xf0] sm:$0xff]
  %v499 = vld [vmem:[%s3 + $0xf8] sm:$0xff]
  %v500 = vld [vmem:[%s3 + $0x100] sm:$0xff]
  %v501 = vld [vmem:[%s3 + $0x108] sm:$0xff]
  %v502 = vld [vmem:[%s3 + $0x110] sm:$0xff]
  %v503 = vld [vmem:[%s3 + $0x118] sm:$0xff]
  %v504 = vld [vmem:[%s3 + $0x120] sm:$0xff]
  %v505 = vld [vmem:[%s3 + $0x128] sm:$0xff]
  %v506 = vld [vmem:[%s3 + $0x130] sm:$0xff]
  %v507 = vld [vmem:[%s3 + $0x138] sm:$0xff]
  %v508 = vld [vmem:[%s3 + $0x140] sm:$0xff]
  %v509 = vld [vmem:[%s3 + $0x148] sm:$0xff]
  %v510 = vld [vmem:[%s3 + $0x150] sm:$0xff]
  %v511 = vld [vmem:[%s3 + $0x158] sm:$0xff]
  %v512 = vld [vmem:[%s3 + $0x160] sm:$0xff]
  %v513 = vld [vmem:[%s3 + $0x168] sm:$0xff]
  %v514 = vld [vmem:[%s3 + $0x170] sm:$0xff]
  %v515 = vld [vmem:[%s3 + $0x178] sm:$0xff]
  %v516 = vld [vmem:[%s3 + $0x180] sm:$0xff]
  %v517 = vld [vmem:[%s3 + $0x188] sm:$0xff]
  %v518 = vld [vmem:[%s3 + $0x190] sm:$0xff]
  %v519 = vld [vmem:[%s3 + $0x198] sm:$0xff]
  %v520 = vld [vmem:[%s3 + $0x1a0] sm:$0xff]
  %v521 = vld [vmem:[%s3 + $0x1a8] sm:$0xff]
  %v522 = vld [vmem:[%s3 + $0x1b0] sm:$0xff]
  %v523 = vld [vmem:[%s3 + $0x1b8] sm:$0xff]
  %v524 = vld [vmem:[%s3 + $0x1c0] sm:$0xff]
  %v525 = vld [vmem:[%s3 + $0x1c8] sm:$0xff]
  %v526 = vld [vmem:[%s3 + $0x1d0] sm:$0xff]
  %v527 = vld [vmem:[%s3 + $0x1d8] sm:$0xff]
  %v528 = vld [vmem:[%s3 + $0x1e0] sm:$0xff]
  %v529 = vld [vmem:[%s3 + $0x1e8] sm:$0xff]
  %v530 = vld [vmem:[%s3 + $0x1f0] sm:$0xff]
  %v531 = vld [vmem:[%s3 + $0x1f8] sm:$0xff]
  %v532 = vld [vmem:[%s3 + $0x200] sm:$0xff]
  %v533 = vld [vmem:[%s3 + $0x208] sm:$0xff]
  %v534 = vld [vmem:[%s3 + $0x210] sm:$0xff]
  %v535 = vld [vmem:[%s3 + $0x218] sm:$0xff]
  %v536 = vld [vmem:[%s3 + $0x220] sm:$0xff]
  %v537 = vld [vmem:[%s3 + $0x228] sm:$0xff]
  %v538 = vld [vmem:[%s3 + $0x230] sm:$0xff]
  %v539 = vld [vmem:[%s3 + $0x238] sm:$0xff]
  %v540 = vld [vmem:[%s3 + $0x240] sm:$0xff]
  %v541 = vld [vmem:[%s3 + $0x248] sm:$0xff]
  %v542 = vld [vmem:[%s3 + $0x250] sm:$0xff]
  %v543 = vld [vmem:[%s3 + $0x258] sm:$0xff]
  %v544 = vld [vmem:[%s3 + $0x260] sm:$0xff]
  %v545 = vld [vmem:[%s3 + $0x268] sm:$0xff]
  %v546 = vld [vmem:[%s3 + $0x270] sm:$0xff]
  %v547 = vld [vmem:[%s3 + $0x278] sm:$0xff]
  %v548 = vld [vmem:[%s3 + $0x280] sm:$0xff]
  %v549 = vld [vmem:[%s3 + $0x288] sm:$0xff]
  %v550 = vld [vmem:[%s3 + $0x290] sm:$0xff]
  %v551 = vld [vmem:[%s3 + $0x298] sm:$0xff]
  %v552 = vld [vmem:[%s3 + $0x2a0] sm:$0xff]
  %v553 = vld [vmem:[%s3 + $0x2a8] sm:$0xff]
  %v554 = vld [vmem:[%s3 + $0x2b0] sm:$0xff]
  %v555 = vld [vmem:[%s3 + $0x2b8] sm:$0xff]
  %v556 = vld [vmem:[%s3 + $0x2c0] sm:$0xff]
  %v557 = vld [vmem:[%s3 + $0x2c8] sm:$0xff]
  %v558 = vld [vmem:[%s3 + $0x2d0] sm:$0xff]
  %v559 = vld [vmem:[%s3 + $0x2d8] sm:$0xff]
  %v560 = vld [vmem:[%s3 + $0x2e0] sm:$0xff]
  %v561 = vld [vmem:[%s3 + $0x2e8] sm:$0xff]
  %v562 = vld [vmem:[%s3 + $0x2f0] sm:$0xff]
  %v563 = vld [vmem:[%s3 + $0x2f8] sm:$0xff]
  %v564 = vld [vmem:[%s3 + $0x300] sm:$0xff]
  %v565 = vld [vmem:[%s3 + $0x308] sm:$0xff]
  %v566 = vld [vmem:[%s3 + $0x310] sm:$0xff]
  %v567 = vld [vmem:[%s3 + $0x318] sm:$0xff]
  %v568 = vld [vmem:[%s3 + $0x320] sm:$0xff]
  %v569 = vld [vmem:[%s3 + $0x328] sm:$0xff]
  %v570 = vld [vmem:[%s3 + $0x330] sm:$0xff]
  %v571 = vld [vmem:[%s3 + $0x338] sm:$0xff]
  %v572 = vld [vmem:[%s3 + $0x340] sm:$0xff]
  %v573 = vld [vmem:[%s3 + $0x348] sm:$0xff]
  %v574 = vld [vmem:[%s3 + $0x350] sm:$0xff]
  %v575 = vld [vmem:[%s3 + $0x358] sm:$0xff]
  %v576 = vld [vmem:[%s3 + $0x360] sm:$0xff]
  %v577 = vld [vmem:[%s3 + $0x368] sm:$0xff]
  %v578 = vld [vmem:[%s3 + $0x370] sm:$0xff]
  %v579 = vld [vmem:[%s3 + $0x378] sm:$0xff]
  %v580 = vld [vmem:[%s3 + $0x380] sm:$0xff]
  %v581 = vld [vmem:[%s3 + $0x388] sm:$0xff]
  %v582 = vld [vmem:[%s3 + $0x390] sm:$0xff]
  %v583 = vld [vmem:[%s3 + $0x398] sm:$0xff]
  %v584 = vld [vmem:[%s3 + $0x3a0] sm:$0xff]
  %v585 = vld [vmem:[%s3 + $0x3a8] sm:$0xff]
  %v586 = vld [vmem:[%s3 + $0x3b0] sm:$0xff]
  %v587 = vld [vmem:[%s3 + $0x3b8] sm:$0xff]
  %v588 = vld [vmem:[%s3 + $0x3c0] sm:$0xff]
  %v589 = vld [vmem:[%s3 + $0x3c8] sm:$0xff]
  %v590 = vld [vmem:[%s3 + $0x3d0] sm:$0xff]
  %v591 = vld [vmem:[%s3 + $0x3d8] sm:$0xff]
  %v592 = vld [vmem:[%s3 + $0x3e0] sm:$0xff]
  %v593 = vld [vmem:[%s3 + $0x3e8] sm:$0xff]
  %v594 = vld [vmem:[%s3 + $0x3f0] sm:$0xff]
  %v595 = vld [vmem:[%s3 + $0x3f8] sm:$0xff]
  %v596 = vld [vmem:[%s4] sm:$0x3]
  %v598 = vlaneseq
  %v599 = vshrl.u32 %v598, 7
  %v600 = vsub.s32 0, %v599
  %v601 = vrot.slane %v596, %v600
  %v602 = vlaneseq
  %v603 = vshrl.u32 %v602, 7
  %v604 = vsub.s32 1, %v603
  %v605 = vrot.slane %v596, %v604
  %v736 = vunpack.c.l.b16 %v468
  %v737 = vunpack.c.h.b16 %v468
  %v738 = vunpack.c.l.b16 %v469
  %v739 = vunpack.c.h.b16 %v469
  %v740 = vunpack.c.l.b16 %v470
  %v741 = vunpack.c.h.b16 %v470
  %v742 = vunpack.c.l.b16 %v471
  %v743 = vunpack.c.h.b16 %v471
  %v744 = vunpack.c.l.b16 %v472
  %v745 = vunpack.c.h.b16 %v472
  %v746 = vunpack.c.l.b16 %v473
  %v747 = vunpack.c.h.b16 %v473
  %v748 = vunpack.c.l.b16 %v474
  %v749 = vunpack.c.h.b16 %v474
  %v750 = vunpack.c.l.b16 %v475
  %v751 = vunpack.c.h.b16 %v475
  %v752 = vunpack.c.l.b16 %v476
  %v753 = vunpack.c.h.b16 %v476
  %v754 = vunpack.c.l.b16 %v477
  %v755 = vunpack.c.h.b16 %v477
  %v756 = vunpack.c.l.b16 %v478
  %v757 = vunpack.c.h.b16 %v478
  %v758 = vunpack.c.l.b16 %v479
  %v759 = vunpack.c.h.b16 %v479
  %v760 = vunpack.c.l.b16 %v480
  %v761 = vunpack.c.h.b16 %v480
  %v762 = vunpack.c.l.b16 %v481
  %v763 = vunpack.c.h.b16 %v481
  %v764 = vunpack.c.l.b16 %v482
  %v765 = vunpack.c.h.b16 %v482
  %v766 = vunpack.c.l.b16 %v483
  %v767 = vunpack.c.h.b16 %v483
  %v768 = vunpack.c.l.b16 %v484
  %v769 = vunpack.c.h.b16 %v484
  %v770 = vunpack.c.l.b16 %v485
  %v771 = vunpack.c.h.b16 %v485
  %v772 = vunpack.c.l.b16 %v486
  %v773 = vunpack.c.h.b16 %v486
  %v774 = vunpack.c.l.b16 %v487
  %v775 = vunpack.c.h.b16 %v487
  %v776 = vunpack.c.l.b16 %v488
  %v777 = vunpack.c.h.b16 %v488
  %v778 = vunpack.c.l.b16 %v489
  %v779 = vunpack.c.h.b16 %v489
  %v780 = vunpack.c.l.b16 %v490
  %v781 = vunpack.c.h.b16 %v490
  %v782 = vunpack.c.l.b16 %v491
  %v783 = vunpack.c.h.b16 %v491
  %v784 = vunpack.c.l.b16 %v492
  %v785 = vunpack.c.h.b16 %v492
  %v786 = vunpack.c.l.b16 %v493
  %v787 = vunpack.c.h.b16 %v493
  %v788 = vunpack.c.l.b16 %v494
  %v789 = vunpack.c.h.b16 %v494
  %v790 = vunpack.c.l.b16 %v495
  %v791 = vunpack.c.h.b16 %v495
  %v792 = vunpack.c.l.b16 %v496
  %v793 = vunpack.c.h.b16 %v496
  %v794 = vunpack.c.l.b16 %v497
  %v795 = vunpack.c.h.b16 %v497
  %v796 = vunpack.c.l.b16 %v498
  %v797 = vunpack.c.h.b16 %v498
  %v798 = vunpack.c.l.b16 %v499
  %v799 = vunpack.c.h.b16 %v499
  %v800 = vunpack.c.l.b16 %v500
  %v801 = vunpack.c.h.b16 %v500
  %v802 = vunpack.c.l.b16 %v501
  %v803 = vunpack.c.h.b16 %v501
  %v804 = vunpack.c.l.b16 %v502
  %v805 = vunpack.c.h.b16 %v502
  %v806 = vunpack.c.l.b16 %v503
  %v807 = vunpack.c.h.b16 %v503
  %v808 = vunpack.c.l.b16 %v504
  %v809 = vunpack.c.h.b16 %v504
  %v810 = vunpack.c.l.b16 %v505
  %v811 = vunpack.c.h.b16 %v505
  %v812 = vunpack.c.l.b16 %v506
  %v813 = vunpack.c.h.b16 %v506
  %v814 = vunpack.c.l.b16 %v507
  %v815 = vunpack.c.h.b16 %v507
  %v816 = vunpack.c.l.b16 %v508
  %v817 = vunpack.c.h.b16 %v508
  %v818 = vunpack.c.l.b16 %v509
  %v819 = vunpack.c.h.b16 %v509
  %v820 = vunpack.c.l.b16 %v510
  %v821 = vunpack.c.h.b16 %v510
  %v822 = vunpack.c.l.b16 %v511
  %v823 = vunpack.c.h.b16 %v511
  %v824 = vunpack.c.l.b16 %v512
  %v825 = vunpack.c.h.b16 %v512
  %v826 = vunpack.c.l.b16 %v513
  %v827 = vunpack.c.h.b16 %v513
  %v828 = vunpack.c.l.b16 %v514
  %v829 = vunpack.c.h.b16 %v514
  %v830 = vunpack.c.l.b16 %v515
  %v831 = vunpack.c.h.b16 %v515
  %v832 = vunpack.c.l.b16 %v516
  %v833 = vunpack.c.h.b16 %v516
  %v834 = vunpack.c.l.b16 %v517
  %v835 = vunpack.c.h.b16 %v517
  %v836 = vunpack.c.l.b16 %v518
  %v837 = vunpack.c.h.b16 %v518
  %v838 = vunpack.c.l.b16 %v519
  %v839 = vunpack.c.h.b16 %v519
  %v840 = vunpack.c.l.b16 %v520
  %v841 = vunpack.c.h.b16 %v520
  %v842 = vunpack.c.l.b16 %v521
  %v843 = vunpack.c.h.b16 %v521
  %v844 = vunpack.c.l.b16 %v522
  %v845 = vunpack.c.h.b16 %v522
  %v846 = vunpack.c.l.b16 %v523
  %v847 = vunpack.c.h.b16 %v523
  %v848 = vunpack.c.l.b16 %v524
  %v849 = vunpack.c.h.b16 %v524
  %v850 = vunpack.c.l.b16 %v525
  %v851 = vunpack.c.h.b16 %v525
  %v852 = vunpack.c.l.b16 %v526
  %v853 = vunpack.c.h.b16 %v526
  %v854 = vunpack.c.l.b16 %v527
  %v855 = vunpack.c.h.b16 %v527
  %v856 = vunpack.c.l.b16 %v528
  %v857 = vunpack.c.h.b16 %v528
  %v858 = vunpack.c.l.b16 %v529
  %v859 = vunpack.c.h.b16 %v529
  %v860 = vunpack.c.l.b16 %v530
  %v861 = vunpack.c.h.b16 %v530
  %v862 = vunpack.c.l.b16 %v531
  %v863 = vunpack.c.h.b16 %v531
  %v864 = vunpack.c.l.b16 %v532
  %v865 = vunpack.c.h.b16 %v532
  %v866 = vunpack.c.l.b16 %v533
  %v867 = vunpack.c.h.b16 %v533
  %v868 = vunpack.c.l.b16 %v534
  %v869 = vunpack.c.h.b16 %v534
  %v870 = vunpack.c.l.b16 %v535
  %v871 = vunpack.c.h.b16 %v535
  %v872 = vunpack.c.l.b16 %v536
  %v873 = vunpack.c.h.b16 %v536
  %v874 = vunpack.c.l.b16 %v537
  %v875 = vunpack.c.h.b16 %v537
  %v876 = vunpack.c.l.b16 %v538
  %v877 = vunpack.c.h.b16 %v538
  %v878 = vunpack.c.l.b16 %v539
  %v879 = vunpack.c.h.b16 %v539
  %v880 = vunpack.c.l.b16 %v540
  %v881 = vunpack.c.h.b16 %v540
  %v882 = vunpack.c.l.b16 %v541
  %v883 = vunpack.c.h.b16 %v541
  %v884 = vunpack.c.l.b16 %v542
  %v885 = vunpack.c.h.b16 %v542
  %v886 = vunpack.c.l.b16 %v543
  %v887 = vunpack.c.h.b16 %v543
  %v888 = vunpack.c.l.b16 %v544
  %v889 = vunpack.c.h.b16 %v544
  %v890 = vunpack.c.l.b16 %v545
  %v891 = vunpack.c.h.b16 %v545
  %v892 = vunpack.c.l.b16 %v546
  %v893 = vunpack.c.h.b16 %v546
  %v894 = vunpack.c.l.b16 %v547
  %v895 = vunpack.c.h.b16 %v547
  %v896 = vunpack.c.l.b16 %v548
  %v897 = vunpack.c.h.b16 %v548
  %v898 = vunpack.c.l.b16 %v549
  %v899 = vunpack.c.h.b16 %v549
  %v900 = vunpack.c.l.b16 %v550
  %v901 = vunpack.c.h.b16 %v550
  %v902 = vunpack.c.l.b16 %v551
  %v903 = vunpack.c.h.b16 %v551
  %v904 = vunpack.c.l.b16 %v552
  %v905 = vunpack.c.h.b16 %v552
  %v906 = vunpack.c.l.b16 %v553
  %v907 = vunpack.c.h.b16 %v553
  %v908 = vunpack.c.l.b16 %v554
  %v909 = vunpack.c.h.b16 %v554
  %v910 = vunpack.c.l.b16 %v555
  %v911 = vunpack.c.h.b16 %v555
  %v912 = vunpack.c.l.b16 %v556
  %v913 = vunpack.c.h.b16 %v556
  %v914 = vunpack.c.l.b16 %v557
  %v915 = vunpack.c.h.b16 %v557
  %v916 = vunpack.c.l.b16 %v558
  %v917 = vunpack.c.h.b16 %v558
  %v918 = vunpack.c.l.b16 %v559
  %v919 = vunpack.c.h.b16 %v559
  %v920 = vunpack.c.l.b16 %v560
  %v921 = vunpack.c.h.b16 %v560
  %v922 = vunpack.c.l.b16 %v561
  %v923 = vunpack.c.h.b16 %v561
  %v924 = vunpack.c.l.b16 %v562
  %v925 = vunpack.c.h.b16 %v562
  %v926 = vunpack.c.l.b16 %v563
  %v927 = vunpack.c.h.b16 %v563
  %v928 = vunpack.c.l.b16 %v564
  %v929 = vunpack.c.h.b16 %v564
  %v930 = vunpack.c.l.b16 %v565
  %v931 = vunpack.c.h.b16 %v565
  %v932 = vunpack.c.l.b16 %v566
  %v933 = vunpack.c.h.b16 %v566
  %v934 = vunpack.c.l.b16 %v567
  %v935 = vunpack.c.h.b16 %v567
  %v936 = vunpack.c.l.b16 %v568
  %v937 = vunpack.c.h.b16 %v568
  %v938 = vunpack.c.l.b16 %v569
  %v939 = vunpack.c.h.b16 %v569
  %v940 = vunpack.c.l.b16 %v570
  %v941 = vunpack.c.h.b16 %v570
  %v942 = vunpack.c.l.b16 %v571
  %v943 = vunpack.c.h.b16 %v571
  %v944 = vunpack.c.l.b16 %v572
  %v945 = vunpack.c.h.b16 %v572
  %v946 = vunpack.c.l.b16 %v573
  %v947 = vunpack.c.h.b16 %v573
  %v948 = vunpack.c.l.b16 %v574
  %v949 = vunpack.c.h.b16 %v574
  %v950 = vunpack.c.l.b16 %v575
  %v951 = vunpack.c.h.b16 %v575
  %v952 = vunpack.c.l.b16 %v576
  %v953 = vunpack.c.h.b16 %v576
  %v954 = vunpack.c.l.b16 %v577
  %v955 = vunpack.c.h.b16 %v577
  %v956 = vunpack.c.l.b16 %v578
  %v957 = vunpack.c.h.b16 %v578
  %v958 = vunpack.c.l.b16 %v579
  %v959 = vunpack.c.h.b16 %v579
  %v960 = vunpack.c.l.b16 %v580
  %v961 = vunpack.c.h.b16 %v580
  %v962 = vunpack.c.l.b16 %v581
  %v963 = vunpack.c.h.b16 %v581
  %v964 = vunpack.c.l.b16 %v582
  %v965 = vunpack.c.h.b16 %v582
  %v966 = vunpack.c.l.b16 %v583
  %v967 = vunpack.c.h.b16 %v583
  %v968 = vunpack.c.l.b16 %v584
  %v969 = vunpack.c.h.b16 %v584
  %v970 = vunpack.c.l.b16 %v585
  %v971 = vunpack.c.h.b16 %v585
  %v972 = vunpack.c.l.b16 %v586
  %v973 = vunpack.c.h.b16 %v586
  %v974 = vunpack.c.l.b16 %v587
  %v975 = vunpack.c.h.b16 %v587
  %v976 = vunpack.c.l.b16 %v588
  %v977 = vunpack.c.h.b16 %v588
  %v978 = vunpack.c.l.b16 %v589
  %v979 = vunpack.c.h.b16 %v589
  %v980 = vunpack.c.l.b16 %v590
  %v981 = vunpack.c.h.b16 %v590
  %v982 = vunpack.c.l.b16 %v591
  %v983 = vunpack.c.h.b16 %v591
  %v984 = vunpack.c.l.b16 %v592
  %v985 = vunpack.c.h.b16 %v592
  %v986 = vunpack.c.l.b16 %v593
  %v987 = vunpack.c.h.b16 %v593
  %v988 = vunpack.c.l.b16 %v594
  %v989 = vunpack.c.h.b16 %v594
  %v990 = vunpack.c.l.b16 %v595
  %v991 = vunpack.c.h.b16 %v595
  %v992 = vpack.c.b16 %v738, %v736
  %v993 = vpack.c.b16 %v739, %v737
  %v994 = vpack.c.b16 %v742, %v740
  %v995 = vpack.c.b16 %v743, %v741
  %v996 = vpack.c.b16 %v746, %v744
  %v997 = vpack.c.b16 %v747, %v745
  %v998 = vpack.c.b16 %v750, %v748
  %v999 = vpack.c.b16 %v751, %v749
  %v1000 = vpack.c.b16 %v754, %v752
  %v1001 = vpack.c.b16 %v755, %v753
  %v1002 = vpack.c.b16 %v758, %v756
  %v1003 = vpack.c.b16 %v759, %v757
  %v1004 = vpack.c.b16 %v762, %v760
  %v1005 = vpack.c.b16 %v763, %v761
  %v1006 = vpack.c.b16 %v766, %v764
  %v1007 = vpack.c.b16 %v767, %v765
  %v1008 = vpack.c.b16 %v770, %v768
  %v1009 = vpack.c.b16 %v771, %v769
  %v1010 = vpack.c.b16 %v774, %v772
  %v1011 = vpack.c.b16 %v775, %v773
  %v1012 = vpack.c.b16 %v778, %v776
  %v1013 = vpack.c.b16 %v779, %v777
  %v1014 = vpack.c.b16 %v782, %v780
  %v1015 = vpack.c.b16 %v783, %v781
  %v1016 = vpack.c.b16 %v786, %v784
  %v1017 = vpack.c.b16 %v787, %v785
  %v1018 = vpack.c.b16 %v790, %v788
  %v1019 = vpack.c.b16 %v791, %v789
  %v1020 = vpack.c.b16 %v794, %v792
  %v1021 = vpack.c.b16 %v795, %v793
  %v1022 = vpack.c.b16 %v798, %v796
  %v1023 = vpack.c.b16 %v799, %v797
  %v1024 = vpack.c.b16 %v802, %v800
  %v1025 = vpack.c.b16 %v803, %v801
  %v1026 = vpack.c.b16 %v806, %v804
  %v1027 = vpack.c.b16 %v807, %v805
  %v1028 = vpack.c.b16 %v810, %v808
  %v1029 = vpack.c.b16 %v811, %v809
  %v1030 = vpack.c.b16 %v814, %v812
  %v1031 = vpack.c.b16 %v815, %v813
  %v1032 = vpack.c.b16 %v818, %v816
  %v1033 = vpack.c.b16 %v819, %v817
  %v1034 = vpack.c.b16 %v822, %v820
  %v1035 = vpack.c.b16 %v823, %v821
  %v1036 = vpack.c.b16 %v826, %v824
  %v1037 = vpack.c.b16 %v827, %v825
  %v1038 = vpack.c.b16 %v830, %v828
  %v1039 = vpack.c.b16 %v831, %v829
  %v1040 = vpack.c.b16 %v834, %v832
  %v1041 = vpack.c.b16 %v835, %v833
  %v1042 = vpack.c.b16 %v838, %v836
  %v1043 = vpack.c.b16 %v839, %v837
  %v1044 = vpack.c.b16 %v842, %v840
  %v1045 = vpack.c.b16 %v843, %v841
  %v1046 = vpack.c.b16 %v846, %v844
  %v1047 = vpack.c.b16 %v847, %v845
  %v1048 = vpack.c.b16 %v850, %v848
  %v1049 = vpack.c.b16 %v851, %v849
  %v1050 = vpack.c.b16 %v854, %v852
  %v1051 = vpack.c.b16 %v855, %v853
  %v1052 = vpack.c.b16 %v858, %v856
  %v1053 = vpack.c.b16 %v859, %v857
  %v1054 = vpack.c.b16 %v862, %v860
  %v1055 = vpack.c.b16 %v863, %v861
  %v1056 = vpack.c.b16 %v866, %v864
  %v1057 = vpack.c.b16 %v867, %v865
  %v1058 = vpack.c.b16 %v870, %v868
  %v1059 = vpack.c.b16 %v871, %v869
  %v1060 = vpack.c.b16 %v874, %v872
  %v1061 = vpack.c.b16 %v875, %v873
  %v1062 = vpack.c.b16 %v878, %v876
  %v1063 = vpack.c.b16 %v879, %v877
  %v1064 = vpack.c.b16 %v882, %v880
  %v1065 = vpack.c.b16 %v883, %v881
  %v1066 = vpack.c.b16 %v886, %v884
  %v1067 = vpack.c.b16 %v887, %v885
  %v1068 = vpack.c.b16 %v890, %v888
  %v1069 = vpack.c.b16 %v891, %v889
  %v1070 = vpack.c.b16 %v894, %v892
  %v1071 = vpack.c.b16 %v895, %v893
  %v1072 = vpack.c.b16 %v898, %v896
  %v1073 = vpack.c.b16 %v899, %v897
  %v1074 = vpack.c.b16 %v902, %v900
  %v1075 = vpack.c.b16 %v903, %v901
  %v1076 = vpack.c.b16 %v906, %v904
  %v1077 = vpack.c.b16 %v907, %v905
  %v1078 = vpack.c.b16 %v910, %v908
  %v1079 = vpack.c.b16 %v911, %v909
  %v1080 = vpack.c.b16 %v914, %v912
  %v1081 = vpack.c.b16 %v915, %v913
  %v1082 = vpack.c.b16 %v918, %v916
  %v1083 = vpack.c.b16 %v919, %v917
  %v1084 = vpack.c.b16 %v922, %v920
  %v1085 = vpack.c.b16 %v923, %v921
  %v1086 = vpack.c.b16 %v926, %v924
  %v1087 = vpack.c.b16 %v927, %v925
  %v1088 = vpack.c.b16 %v930, %v928
  %v1089 = vpack.c.b16 %v931, %v929
  %v1090 = vpack.c.b16 %v934, %v932
  %v1091 = vpack.c.b16 %v935, %v933
  %v1092 = vpack.c.b16 %v938, %v936
  %v1093 = vpack.c.b16 %v939, %v937
  %v1094 = vpack.c.b16 %v942, %v940
  %v1095 = vpack.c.b16 %v943, %v941
  %v1096 = vpack.c.b16 %v946, %v944
  %v1097 = vpack.c.b16 %v947, %v945
  %v1098 = vpack.c.b16 %v950, %v948
  %v1099 = vpack.c.b16 %v951, %v949
  %v1100 = vpack.c.b16 %v954, %v952
  %v1101 = vpack.c.b16 %v955, %v953
  %v1102 = vpack.c.b16 %v958, %v956
  %v1103 = vpack.c.b16 %v959, %v957
  %v1104 = vpack.c.b16 %v962, %v960
  %v1105 = vpack.c.b16 %v963, %v961
  %v1106 = vpack.c.b16 %v966, %v964
  %v1107 = vpack.c.b16 %v967, %v965
  %v1108 = vpack.c.b16 %v970, %v968
  %v1109 = vpack.c.b16 %v971, %v969
  %v1110 = vpack.c.b16 %v974, %v972
  %v1111 = vpack.c.b16 %v975, %v973
  %v1112 = vpack.c.b16 %v978, %v976
  %v1113 = vpack.c.b16 %v979, %v977
  %v1114 = vpack.c.b16 %v982, %v980
  %v1115 = vpack.c.b16 %v983, %v981
  %v1116 = vpack.c.b16 %v986, %v984
  %v1117 = vpack.c.b16 %v987, %v985
  %v1118 = vpack.c.b16 %v990, %v988
  %v1119 = vpack.c.b16 %v991, %v989
  %1248 = vmatprep.subr.bf16.mxu0 %v993
  %1249 = vmatpush1.bf16.msra.mxu0 %v992
  %1250 = vmatprep.subr.bf16.mxu0 %v995
  %1251 = vmatpush1.bf16.msra.mxu0 %v994
  %1252 = vmatprep.subr.bf16.mxu0 %v997
  %1253 = vmatpush1.bf16.msra.mxu0 %v996
  %1254 = vmatprep.subr.bf16.mxu0 %v999
  %1255 = vmatpush1.bf16.msra.mxu0 %v998
  %1256 = vmatprep.subr.bf16.mxu0 %v1001
  %1257 = vmatpush1.bf16.msra.mxu0 %v1000
  %1258 = vmatprep.subr.bf16.mxu0 %v1003
  %1259 = vmatpush1.bf16.msra.mxu0 %v1002
  %1260 = vmatprep.subr.bf16.mxu0 %v1005
  %1261 = vmatpush1.bf16.msra.mxu0 %v1004
  %1262 = vmatprep.subr.bf16.mxu0 %v1007
  %1263 = vmatpush1.bf16.msra.mxu0 %v1006
  %1264 = vmatprep.subr.bf16.mxu0 %v1009
  %1265 = vmatpush1.bf16.msra.mxu0 %v1008
  %1266 = vmatprep.subr.bf16.mxu0 %v1011
  %1267 = vmatpush1.bf16.msra.mxu0 %v1010
  %1268 = vmatprep.subr.bf16.mxu0 %v1013
  %1269 = vmatpush1.bf16.msra.mxu0 %v1012
  %1270 = vmatprep.subr.bf16.mxu0 %v1015
  %1271 = vmatpush1.bf16.msra.mxu0 %v1014
  %1272 = vmatprep.subr.bf16.mxu0 %v1017
  %1273 = vmatpush1.bf16.msra.mxu0 %v1016
  %1274 = vmatprep.subr.bf16.mxu0 %v1019
  %1275 = vmatpush1.bf16.msra.mxu0 %v1018
  %1276 = vmatprep.subr.bf16.mxu0 %v1021
  %1277 = vmatpush1.bf16.msra.mxu0 %v1020
  %1278 = vmatprep.subr.bf16.mxu0 %v1023
  %1279 = vmatpush1.bf16.msra.mxu0 %v1022
  %1280 = vmatprep.mubr.bf16.mxu0 %v461
  %1281 = vmatmul.mubr.bf16.gmra.mrb[0].mxu0 %v460
  %v1282 = vpop.f32.mrb[0].mxu0
  %v1283 = vadd.f32 %v601, %v1282
  %v1284 = vpop.f32.mrb[0].mxu0
  %v1285 = vadd.f32 %v605, %v1284
  %v1286 = vpop.f32.mrb[0].mxu0
  %v1287 = vadd.f32 %v601, %v1286
  %v1288 = vpop.f32.mrb[0].mxu0
  %v1289 = vadd.f32 %v605, %v1288
  %1290 = vdwg.mxu0
  %1291 = vmatprep.subr.bf16.mxu0 %v1025
  %1292 = vmatpush1.bf16.msra.mxu0 %v1024
  %1293 = vmatprep.subr.bf16.mxu0 %v1027
  %1294 = vmatpush1.bf16.msra.mxu0 %v1026
  %1295 = vmatprep.subr.bf16.mxu0 %v1029
  %1296 = vmatpush1.bf16.msra.mxu0 %v1028
  %1297 = vmatprep.subr.bf16.mxu0 %v1031
  %1298 = vmatpush1.bf16.msra.mxu0 %v1030
  %1299 = vmatprep.subr.bf16.mxu0 %v1033
  %1300 = vmatpush1.bf16.msra.mxu0 %v1032
  %1301 = vmatprep.subr.bf16.mxu0 %v1035
  %1302 = vmatpush1.bf16.msra.mxu0 %v1034
  %1303 = vmatprep.subr.bf16.mxu0 %v1037
  %1304 = vmatpush1.bf16.msra.mxu0 %v1036
  %1305 = vmatprep.subr.bf16.mxu0 %v1039
  %1306 = vmatpush1.bf16.msra.mxu0 %v1038
  %1307 = vmatprep.subr.bf16.mxu0 %v1041
  %1308 = vmatpush1.bf16.msra.mxu0 %v1040
  %1309 = vmatprep.subr.bf16.mxu0 %v1043
  %1310 = vmatpush1.bf16.msra.mxu0 %v1042
  %1311 = vmatprep.subr.bf16.mxu0 %v1045
  %1312 = vmatpush1.bf16.msra.mxu0 %v1044
  %1313 = vmatprep.subr.bf16.mxu0 %v1047
  %1314 = vmatpush1.bf16.msra.mxu0 %v1046
  %1315 = vmatprep.subr.bf16.mxu0 %v1049
  %1316 = vmatpush1.bf16.msra.mxu0 %v1048
  %1317 = vmatprep.subr.bf16.mxu0 %v1051
  %1318 = vmatpush1.bf16.msra.mxu0 %v1050
  %1319 = vmatprep.subr.bf16.mxu0 %v1053
  %1320 = vmatpush1.bf16.msra.mxu0 %v1052
  %1321 = vmatprep.subr.bf16.mxu0 %v1055
  %1322 = vmatpush1.bf16.msra.mxu0 %v1054
  %1323 = vmatprep.mubr.bf16.mxu0 %v463
  %1324 = vmatmul.mubr.bf16.gmra.mrb[0].mxu0 %v462
  %v1325 = vpop.f32.mrb[0].mxu0
  %v1326 = vadd.f32 %v1283, %v1325
  %v1327 = vpop.f32.mrb[0].mxu0
  %v1328 = vadd.f32 %v1285, %v1327
  %v1329 = vpop.f32.mrb[0].mxu0
  %v1330 = vadd.f32 %v1287, %v1329
  %v1331 = vpop.f32.mrb[0].mxu0
  %v1332 = vadd.f32 %v1289, %v1331
  %1333 = vdwg.mxu0
  %1334 = vmatprep.subr.bf16.mxu0 %v1057
  %1335 = vmatpush1.bf16.msra.mxu0 %v1056
  %1336 = vmatprep.subr.bf16.mxu0 %v1059
  %1337 = vmatpush1.bf16.msra.mxu0 %v1058
  %1338 = vmatprep.subr.bf16.mxu0 %v1061
  %1339 = vmatpush1.bf16.msra.mxu0 %v1060
  %1340 = vmatprep.subr.bf16.mxu0 %v1063
  %1341 = vmatpush1.bf16.msra.mxu0 %v1062
  %1342 = vmatprep.subr.bf16.mxu0 %v1065
  %1343 = vmatpush1.bf16.msra.mxu0 %v1064
  %1344 = vmatprep.subr.bf16.mxu0 %v1067
  %1345 = vmatpush1.bf16.msra.mxu0 %v1066
  %1346 = vmatprep.subr.bf16.mxu0 %v1069
  %1347 = vmatpush1.bf16.msra.mxu0 %v1068
  %1348 = vmatprep.subr.bf16.mxu0 %v1071
  %1349 = vmatpush1.bf16.msra.mxu0 %v1070
  %1350 = vmatprep.subr.bf16.mxu0 %v1073
  %1351 = vmatpush1.bf16.msra.mxu0 %v1072
  %1352 = vmatprep.subr.bf16.mxu0 %v1075
  %1353 = vmatpush1.bf16.msra.mxu0 %v1074
  %1354 = vmatprep.subr.bf16.mxu0 %v1077
  %1355 = vmatpush1.bf16.msra.mxu0 %v1076
  %1356 = vmatprep.subr.bf16.mxu0 %v1079
  %1357 = vmatpush1.bf16.msra.mxu0 %v1078
  %1358 = vmatprep.subr.bf16.mxu0 %v1081
  %1359 = vmatpush1.bf16.msra.mxu0 %v1080
  %1360 = vmatprep.subr.bf16.mxu0 %v1083
  %1361 = vmatpush1.bf16.msra.mxu0 %v1082
  %1362 = vmatprep.subr.bf16.mxu0 %v1085
  %1363 = vmatpush1.bf16.msra.mxu0 %v1084
  %1364 = vmatprep.subr.bf16.mxu0 %v1087
  %1365 = vmatpush1.bf16.msra.mxu0 %v1086
  %1366 = vmatprep.mubr.bf16.mxu0 %v465
  %1367 = vmatmul.mubr.bf16.gmra.mrb[0].mxu0 %v464
  %v1368 = vpop.f32.mrb[0].mxu0
  %v1369 = vadd.f32 %v1326, %v1368
  %v1370 = vpop.f32.mrb[0].mxu0
  %v1371 = vadd.f32 %v1328, %v1370
  %v1372 = vpop.f32.mrb[0].mxu0
  %v1373 = vadd.f32 %v1330, %v1372
  %v1374 = vpop.f32.mrb[0].mxu0
  %v1375 = vadd.f32 %v1332, %v1374
  %1376 = vdwg.mxu0
  %1377 = vmatprep.subr.bf16.mxu0 %v1089
  %1378 = vmatpush1.bf16.msra.mxu0 %v1088
  %1379 = vmatprep.subr.bf16.mxu0 %v1091
  %1380 = vmatpush1.bf16.msra.mxu0 %v1090
  %1381 = vmatprep.subr.bf16.mxu0 %v1093
  %1382 = vmatpush1.bf16.msra.mxu0 %v1092
  %1383 = vmatprep.subr.bf16.mxu0 %v1095
  %1384 = vmatpush1.bf16.msra.mxu0 %v1094
  %1385 = vmatprep.subr.bf16.mxu0 %v1097
  %1386 = vmatpush1.bf16.msra.mxu0 %v1096
  %1387 = vmatprep.subr.bf16.mxu0 %v1099
  %1388 = vmatpush1.bf16.msra.mxu0 %v1098
  %1389 = vmatprep.subr.bf16.mxu0 %v1101
  %1390 = vmatpush1.bf16.msra.mxu0 %v1100
  %1391 = vmatprep.subr.bf16.mxu0 %v1103
  %1392 = vmatpush1.bf16.msra.mxu0 %v1102
  %1393 = vmatprep.subr.bf16.mxu0 %v1105
  %1394 = vmatpush1.bf16.msra.mxu0 %v1104
  %1395 = vmatprep.subr.bf16.mxu0 %v1107
  %1396 = vmatpush1.bf16.msra.mxu0 %v1106
  %1397 = vmatprep.subr.bf16.mxu0 %v1109
  %1398 = vmatpush1.bf16.msra.mxu0 %v1108
  %1399 = vmatprep.subr.bf16.mxu0 %v1111
  %1400 = vmatpush1.bf16.msra.mxu0 %v1110
  %1401 = vmatprep.subr.bf16.mxu0 %v1113
  %1402 = vmatpush1.bf16.msra.mxu0 %v1112
  %1403 = vmatprep.subr.bf16.mxu0 %v1115
  %1404 = vmatpush1.bf16.msra.mxu0 %v1114
  %1405 = vmatprep.subr.bf16.mxu0 %v1117
  %1406 = vmatpush1.bf16.msra.mxu0 %v1116
  %1407 = vmatprep.subr.bf16.mxu0 %v1119
  %1408 = vmatpush1.bf16.msra.mxu0 %v1118
  %1409 = vmatprep.mubr.bf16.mxu0 %v467
  %1410 = vmatmul.mubr.bf16.gmra.mrb[0].mxu0 %v466
  %v1411 = vpop.f32.mrb[0].mxu0
  %v1412 = vadd.f32 %v1369, %v1411
  %v1413 = vpop.f32.mrb[0].mxu0
  %v1414 = vadd.f32 %v1371, %v1413
  %v1415 = vpop.f32.mrb[0].mxu0
  %v1416 = vadd.f32 %v1373, %v1415
  %v1417 = vpop.f32.mrb[0].mxu0
  %v1418 = vadd.f32 %v1375, %v1417
  %1419 = vdwg.mxu0
  %v1420 = vmax.f32 %v1412, 0.0
  %v1421 = vmax.f32 %v1414, 0.0
  %v1422 = vmax.f32 %v1416, 0.0
  %v1423 = vmax.f32 %v1418, 0.0
  %v1424 = vpack.c.bf16 %v1422, %v1420
  %v1425 = vpack.c.bf16 %v1423, %v1421
  %v1426 = vld [vmem:[%s5] sm:$0xf]
  %v1427 = vld [vmem:[%s5 + $0x4] sm:$0xf]
  %v1428 = vld [vmem:[%s5 + $0x8] sm:$0xf]
  %v1429 = vld [vmem:[%s5 + $0xc] sm:$0xf]
  %v1430 = vld [vmem:[%s5 + $0x10] sm:$0xf]
  %v1431 = vld [vmem:[%s5 + $0x14] sm:$0xf]
  %v1432 = vld [vmem:[%s5 + $0x18] sm:$0xf]
  %v1433 = vld [vmem:[%s5 + $0x1c] sm:$0xf]
  %v1434 = vld [vmem:[%s5 + $0x20] sm:$0xf]
  %v1435 = vld [vmem:[%s5 + $0x24] sm:$0xf]
  %v1436 = vld [vmem:[%s5 + $0x28] sm:$0xf]
  %v1437 = vld [vmem:[%s5 + $0x2c] sm:$0xf]
  %v1438 = vld [vmem:[%s5 + $0x30] sm:$0xf]
  %v1439 = vld [vmem:[%s5 + $0x34] sm:$0xf]
  %v1440 = vld [vmem:[%s5 + $0x38] sm:$0xf]
  %v1441 = vld [vmem:[%s5 + $0x3c] sm:$0xf]
  %v1442 = vld [vmem:[%s5 + $0x40] sm:$0xf]
  %v1443 = vld [vmem:[%s5 + $0x44] sm:$0xf]
  %v1444 = vld [vmem:[%s5 + $0x48] sm:$0xf]
  %v1445 = vld [vmem:[%s5 + $0x4c] sm:$0xf]
  %v1446 = vld [vmem:[%s5 + $0x50] sm:$0xf]
  %v1447 = vld [vmem:[%s5 + $0x54] sm:$0xf]
  %v1448 = vld [vmem:[%s5 + $0x58] sm:$0xf]
  %v1449 = vld [vmem:[%s5 + $0x5c] sm:$0xf]
  %v1450 = vld [vmem:[%s5 + $0x60] sm:$0xf]
  %v1451 = vld [vmem:[%s5 + $0x64] sm:$0xf]
  %v1452 = vld [vmem:[%s5 + $0x68] sm:$0xf]
  %v1453 = vld [vmem:[%s5 + $0x6c] sm:$0xf]
  %v1454 = vld [vmem:[%s5 + $0x70] sm:$0xf]
  %v1455 = vld [vmem:[%s5 + $0x74] sm:$0xf]
  %v1456 = vld [vmem:[%s5 + $0x78] sm:$0xf]
  %v1457 = vld [vmem:[%s5 + $0x7c] sm:$0xf]
  %v1458 = vld [vmem:[%s6] sm:$0x1]
  %v1460 = vlaneseq
  %v1461 = vshrl.u32 %v1460, 7
  %v1462 = vsub.s32 0, %v1461
  %v1463 = vrot.slane %v1458, %v1462
  %v1497 = vunpack.c.l.b16 %v1426
  %v1498 = vunpack.c.l.b16 %v1427
  %v1499 = vunpack.c.l.b16 %v1428
  %v1500 = vunpack.c.l.b16 %v1429
  %v1501 = vunpack.c.l.b16 %v1430
  %v1502 = vunpack.c.l.b16 %v1431
  %v1503 = vunpack.c.l.b16 %v1432
  %v1504 = vunpack.c.l.b16 %v1433
  %v1505 = vunpack.c.l.b16 %v1434
  %v1506 = vunpack.c.l.b16 %v1435
  %v1507 = vunpack.c.l.b16 %v1436
  %v1508 = vunpack.c.l.b16 %v1437
  %v1509 = vunpack.c.l.b16 %v1438
  %v1510 = vunpack.c.l.b16 %v1439
  %v1511 = vunpack.c.l.b16 %v1440
  %v1512 = vunpack.c.l.b16 %v1441
  %v1513 = vunpack.c.l.b16 %v1442
  %v1514 = vunpack.c.l.b16 %v1443
  %v1515 = vunpack.c.l.b16 %v1444
  %v1516 = vunpack.c.l.b16 %v1445
  %v1517 = vunpack.c.l.b16 %v1446
  %v1518 = vunpack.c.l.b16 %v1447
  %v1519 = vunpack.c.l.b16 %v1448
  %v1520 = vunpack.c.l.b16 %v1449
  %v1521 = vunpack.c.l.b16 %v1450
  %v1522 = vunpack.c.l.b16 %v1451
  %v1523 = vunpack.c.l.b16 %v1452
  %v1524 = vunpack.c.l.b16 %v1453
  %v1525 = vunpack.c.l.b16 %v1454
  %v1526 = vunpack.c.l.b16 %v1455
  %v1527 = vunpack.c.l.b16 %v1456
  %v1528 = vunpack.c.l.b16 %v1457
  %v1529 = vpack.c.b16 %v1498, %v1497
  %v1530 = vpack.c.b16 %v1500, %v1499
  %v1531 = vpack.c.b16 %v1502, %v1501
  %v1532 = vpack.c.b16 %v1504, %v1503
  %v1533 = vpack.c.b16 %v1506, %v1505
  %v1534 = vpack.c.b16 %v1508, %v1507
  %v1535 = vpack.c.b16 %v1510, %v1509
  %v1536 = vpack.c.b16 %v1512, %v1511
  %v1537 = vpack.c.b16 %v1514, %v1513
  %v1538 = vpack.c.b16 %v1516, %v1515
  %v1539 = vpack.c.b16 %v1518, %v1517
  %v1540 = vpack.c.b16 %v1520, %v1519
  %v1541 = vpack.c.b16 %v1522, %v1521
  %v1542 = vpack.c.b16 %v1524, %v1523
  %v1543 = vpack.c.b16 %v1526, %v1525
  %v1544 = vpack.c.b16 %v1528, %v1527
  %1561 = vmatprep.subr.bf16.mxu0 0
  %1562 = vmatpush1.bf16.msra.mxu0 %v1529
  %1563 = vmatprep.subr.bf16.mxu0 0
  %1564 = vmatpush1.bf16.msra.mxu0 %v1530
  %1565 = vmatprep.subr.bf16.mxu0 0
  %1566 = vmatpush1.bf16.msra.mxu0 %v1531
  %1567 = vmatprep.subr.bf16.mxu0 0
  %1568 = vmatpush1.bf16.msra.mxu0 %v1532
  %1569 = vmatprep.subr.bf16.mxu0 0
  %1570 = vmatpush1.bf16.msra.mxu0 %v1533
  %1571 = vmatprep.subr.bf16.mxu0 0
  %1572 = vmatpush1.bf16.msra.mxu0 %v1534
  %1573 = vmatprep.subr.bf16.mxu0 0
  %1574 = vmatpush1.bf16.msra.mxu0 %v1535
  %1575 = vmatprep.subr.bf16.mxu0 0
  %1576 = vmatpush1.bf16.msra.mxu0 %v1536
  %1577 = vmatprep.subr.bf16.mxu0 0
  %1578 = vmatpush1.bf16.msra.mxu0 %v1537
  %1579 = vmatprep.subr.bf16.mxu0 0
  %1580 = vmatpush1.bf16.msra.mxu0 %v1538
  %1581 = vmatprep.subr.bf16.mxu0 0
  %1582 = vmatpush1.bf16.msra.mxu0 %v1539
  %1583 = vmatprep.subr.bf16.mxu0 0
  %1584 = vmatpush1.bf16.msra.mxu0 %v1540
  %1585 = vmatprep.subr.bf16.mxu0 0
  %1586 = vmatpush1.bf16.msra.mxu0 %v1541
  %1587 = vmatprep.subr.bf16.mxu0 0
  %1588 = vmatpush1.bf16.msra.mxu0 %v1542
  %1589 = vmatprep.subr.bf16.mxu0 0
  %1590 = vmatpush1.bf16.msra.mxu0 %v1543
  %1591 = vmatprep.subr.bf16.mxu0 0
  %1592 = vmatpush1.bf16.msra.mxu0 %v1544
  %1593 = vmatprep.mubr.bf16.mxu0 %v1425
  %1594 = vmatmul.mubr.bf16.gmra.mrb[0].mxu0 %v1424
  %v1595 = vpop.f32.mrb[0].mxu0
  %v1596 = vadd.f32 %v1463, %v1595
  %v1597 = vpop.f32.mrb[0].mxu0
  %v1598 = vpop.f32.mrb[0].mxu0
  %v1599 = vadd.f32 %v1463, %v1598
  %v1600 = vpop.f32.mrb[0].mxu0
  %1601 = vdwg.mxu0
  %v1602 = vsub.f32 0.0, %v1596
  %v1603 = vsub.f32 0.0, %v1599
  %v1604 = vmul.f32 %v1602, 1.442695
  %v1605 = vpow.pop %v1604
  %v1606 = vmul.f32 %v1603, 1.442695
  %v1607 = vpow.pop %v1606
  %v1608 = vadd.f32 %v1605, 1.0
  %v1609 = vadd.f32 %v1607, 1.0
  %v1610 = vrcp.pop %v1608
  %v1611 = vrcp.pop %v1609
  %v1612 = vpack.c.bf16 %v1611, %v1610
  %v1614 = vunpack.c.l.b16 %v1612
  %v1615 = vunpack.c.h.b16 %v1612
  %v1616 = vpack.c.b16 %v1614, %v1614
  %v1617 = vpack.c.b16 %v1615, %v1615
  %1620 = vst [vmem:[%s7] sm:$0xf] %v1616
  %1621 = vst [vmem:[%s7 + $0x4] sm:$0xf] %v1617
  // Predicated region
  $region30: #{fcl_forward.1} parent=0 // pred_check
    _
  $region31: #{fcl_forward.1} parent=0 // pred_check_branch
    %1623 = sbr.rel (0) target = $region33
  $region32: #{fcl_forward.1} parent=0 // pred_region
    _
  $region33: #{fcl_forward.1} parent=0 // pred_fallthru
    _
  // Predicated region
  $region34: #{fcl_forward.1} parent=0 // pred_check
    _
  $region35: #{fcl_forward.1} parent=0 // pred_check_branch
    %1625 = sbr.rel (0) target = $region37
  $region36: #{fcl_forward.1} parent=0 // pred_region
    _
  $region37: #{fcl_forward.1} parent=0 // pred_fallthru
    _

</llo_original>
